<compile_context>
chip_gen: v5e
topology: v5e:2x2
jax: 0.10.0
libtpu: 0.0.40
codegen_flags: <defaults>
</compile_context>

<pallas_src>
import math

import jax
import jax.numpy as jnp
from jax.experimental import pallas as pl
from jax.experimental.pallas import tpu as pltpu

# ----------------------------- config ---------------------------------------
B = 2            # batch
S = 8            # sequence length
D = 32           # model dim
N_HEADS = 4      # attention heads
DH = D // N_HEADS
F = 4 * D        # feed-forward hidden dim (= 128, one full lane tile)
LN_EPS = 1e-5
SCALE = 1.0 / math.sqrt(DH)


def _layer_norm(y, gamma, beta):
    # Single-pass: E[x^2] - mu^2 (halves the XLU last-axis reductions).
    mu = jnp.mean(y, axis=-1, keepdims=True)
    ms = jnp.mean(y * y, axis=-1, keepdims=True)
    var = ms - mu * mu
    return (y - mu) * jax.lax.rsqrt(var + LN_EPS) * gamma + beta


# ----------------------------- kernel ---------------------------------------
def eblock_kernel(
    x_ref,     # (B, S, D)   residual stream
    wqkv_ref,  # (D, 3D)     fused QKV projection
    wo_ref,    # (D, D)      attention output projection
    w1_ref,    # (D, F)      ff linear 1
    w2_ref,    # (F, D)      ff linear 2
    vecs_ref,  # (8, F)      packed small vectors (see pack_params)
    out_ref,   # (B, S, D)
):
    f32 = jnp.float32
    x = x_ref[...].astype(f32)            # (B, S, D)
    x2 = x.reshape(B * S, D)              # leading-dim merge: layout-free

    vecs = vecs_ref[...].astype(f32)      # (8, F)
    bqkv = vecs[0:1, :3 * D]              # (1, 3D)
    bf1  = vecs[1:2, :]                   # (1, F)
    bo   = vecs[2:3, :D]                  # (1, D)
    g1   = vecs[3:4, :D]
    be1  = vecs[4:5, :D]
    bf2  = vecs[5:6, :D]
    g2   = vecs[6:7, :D]
    be2  = vecs[7:8, :D]

    # ---- fused QKV projection: ONE MXU push (B*S, D) @ (D, 3D) -------------
    qkv = jnp.dot(x2, wqkv_ref[...], preferred_element_type=f32) + bqkv  # (B*S, 3D)

    wo = wo_ref[...].astype(f32)          # (D, D)

    # ---- multi-head self-attention ------------------------------------------
    # Heads are static 8-lane slices of qkv; the head concat is folded into the
    # output projection (accumulate o_h @ Wo[h*DH:(h+1)*DH, :]).
    h_attn = jnp.zeros((B * S, D), f32)
    for h in range(N_HEADS):
        q = qkv[:, h * DH:(h + 1) * DH].reshape(B, S, DH)               # (B,S,DH)
        k = qkv[:, D + h * DH:D + (h + 1) * DH].reshape(B, S, DH)
        v = qkv[:, 2 * D + h * DH:2 * D + (h + 1) * DH].reshape(B, S, DH)

        s = jnp.einsum("bqe,bke->bqk", q, k,
                       preferred_element_type=f32) * SCALE              # (B,S,S)
        s = s - jnp.max(s, axis=-1, keepdims=True)
        p = jnp.exp(s)
        p = p / jnp.sum(p, axis=-1, keepdims=True)        # exact divide (cheap)
        o = jnp.einsum("bqk,bke->bqe", p, v,
                       preferred_element_type=f32)                      # (B,S,DH)
        h_attn = h_attn + jnp.dot(o.reshape(B * S, DH),
                                  wo[h * DH:(h + 1) * DH, :],
                                  preferred_element_type=f32)           # (B*S,D)
    h_attn = h_attn + bo

    # drop1 is identity in eval mode
    x1 = _layer_norm(x2 + h_attn, g1, be1)                              # (B*S, D)

    # ---- feed-forward: Linear(D,4D) -> ReLU -> Linear(4D,D), 2D matmuls -----
    ff = jnp.dot(x1, w1_ref[...], preferred_element_type=f32) + bf1     # (B*S, F)
    ff = jnp.maximum(ff, 0.0)
    ff = jnp.dot(ff, w2_ref[...], preferred_element_type=f32) + bf2     # (B*S, D)
    # ff dropout is identity in eval mode

    out = _layer_norm(x1 + ff, g2, be2)                                 # (B*S, D)
    out_ref[...] = out.reshape(B, S, D).astype(out_ref.dtype)


# ----------------------------- wrapper ---------------------------------------
def pack_params(params):
    """One-time, wrapper-side packing (hoisted out of the per-call jit path).

    Packs the fused QKV bias and the seven tiny bias/gain vectors into a
    single (8, F) f32 tile so the kernel gets 6 operands total.
    """
    (wqkv, bqkv, wo, bo, g1, be1, w1, bf1, w2, bf2, g2, be2) = params
    vecs = jnp.zeros((8, F), jnp.float32)
    vecs = vecs.at[0, :3 * D].set(bqkv[0])
    vecs = vecs.at[1, :].set(bf1[0])
    vecs = vecs.at[2, :D].set(bo[0])
    vecs = vecs.at[3, :D].set(g1[0])
    vecs = vecs.at[4, :D].set(be1[0])
    vecs = vecs.at[5, :D].set(bf2[0])
    vecs = vecs.at[6, :D].set(g2[0])
    vecs = vecs.at[7, :D].set(be2[0])
    return (wqkv, wo, w1, w2, vecs)


@jax.jit
def eblock_forward(x, packed):
    wqkv, wo, w1, w2, vecs = packed
    vmem = pl.BlockSpec(memory_space=pltpu.MemorySpace.VMEM)  # whole array in VMEM
    out = pl.pallas_call(
        eblock_kernel,
        out_shape=jax.ShapeDtypeStruct((B, S, D), x.dtype),
        in_specs=[vmem] * 6,
        out_specs=vmem,
    )(x, wqkv, wo, w1, w2, vecs)
    # Matches PyTorch forward: return (normed_output, 0)
    return out, 0


def init_params(key):
    ks = jax.random.split(key, 8)

    def u(k, shape, fan_in):
        lim = 1.0 / math.sqrt(fan_in)
        return jax.random.uniform(k, shape, jnp.float32, -lim, lim)

    wqkv = u(ks[0], (D, 3 * D), D)           # fused QKV projection
    bqkv = u(ks[1], (1, 3 * D), D)
    wo   = u(ks[2], (D, D), D)               # attention output projection
    bo   = u(ks[3], (1, D), D)
    g1   = jnp.ones((1, D), jnp.float32)     # norm1
    be1  = jnp.zeros((1, D), jnp.float32)
    w1   = u(ks[4], (D, F), D)               # ff linear 1
    bf1  = u(ks[5], (1, F), D)
    w2   = u(ks[6], (F, D), F)               # ff linear 2
    bf2  = u(ks[7], (1, D), F)
    g2   = jnp.ones((1, D), jnp.float32)     # norm2
    be2  = jnp.zeros((1, D), jnp.float32)
    return (wqkv, bqkv, wo, bo, g1, be1, w1, bf1, w2, bf2, g2, be2)


# ------------------------- pure-JAX reference --------------------------------
def eblock_reference(x, params):
    (wqkv, bqkv, wo, bo, g1, be1, w1, bf1, w2, bf2, g2, be2) = params

    def ln(y, g, b):
        mu = jnp.mean(y, axis=-1, keepdims=True)
        var = jnp.mean((y - mu) ** 2, axis=-1, keepdims=True)
        return (y - mu) * jax.lax.rsqrt(var + LN_EPS) * g + b

    qkv = x @ wqkv + bqkv                                     # (B, S, 3D)
    q, k, v = jnp.split(qkv, 3, axis=-1)

    def heads(t):  # (B, S, D) -> (B, H, S, DH)
        return t.reshape(B, S, N_HEADS, DH).transpose(0, 2, 1, 3)

    qh, kh, vh = heads(q), heads(k), heads(v)
    s = jnp.einsum("bhqd,bhkd->bhqk", qh, kh) / math.sqrt(DH)
    p = jax.nn.softmax(s, axis=-1)
    o = jnp.einsum("bhqk,bhkd->bhqd", p, vh).transpose(0, 2, 1, 3).reshape(B, S, D)
    h_attn = o @ wo + bo
    x1 = ln(x + h_attn, g1, be1)
    ff = jnp.maximum(x1 @ w1 + bf1, 0.0) @ w2 + bf2
    return ln(x1 + ff, g2, be2)


# ------------------------------- main ----------------------------------------
if __name__ == "__main__":
    key = jax.random.PRNGKey(0)
    kx, kp = jax.random.split(key)
    x = jax.random.normal(kx, (B, S, D), jnp.float32)
    params = init_params(kp)

    packed = pack_params(params)          # one-time packing, outside the hot path
    packed = jax.tree_util.tree_map(jax.block_until_ready, packed)

    out, zero = eblock_forward(x, packed)
    out = jax.block_until_ready(out)

    ref = eblock_reference(x, params)
    assert out.shape == (B, S, D)
    assert zero == 0
    # Exact softmax divide now -> only f32 accumulation-order noise remains.
    assert jnp.allclose(out, ref, atol=1e-4, rtol=1e-4), "mismatch vs reference"

    print("KERNEL_OK")
</pallas_src>

<mosaic_0001>
module attributes {stable_mosaic.version = 11 : i64} {
  func.func @eblock_kernel(%arg0: memref<2x8x32xf32, #tpu.memory_space<vmem>>, %arg1: memref<32x96xf32, #tpu.memory_space<vmem>>, %arg2: memref<32x32xf32, #tpu.memory_space<vmem>>, %arg3: memref<32x128xf32, #tpu.memory_space<vmem>>, %arg4: memref<128x32xf32, #tpu.memory_space<vmem>>, %arg5: memref<8x128xf32, #tpu.memory_space<vmem>>, %arg6: memref<2x8x32xf32, #tpu.memory_space<vmem>>) attributes {dimension_semantics = [], scalar_prefetch = 0 : i64, scratch_operands = 0 : i64, tpu.core_type = #tpu.core_type<tc>} {
    %c0 = arith.constant 0 : index
    %c0_0 = arith.constant 0 : index
    %c0_1 = arith.constant 0 : index
    %0 = vector.load %arg0[%c0, %c0_0, %c0_1] : memref<2x8x32xf32, #tpu.memory_space<vmem>>, vector<2x8x32xf32>
    %1 = vector.shape_cast %0 : vector<2x8x32xf32> to vector<16x32xf32>
    %c0_2 = arith.constant 0 : index
    %c0_3 = arith.constant 0 : index
    %2 = vector.load %arg5[%c0_2, %c0_3] : memref<8x128xf32, #tpu.memory_space<vmem>>, vector<8x128xf32>
    %3 = vector.extract_strided_slice %2 {offsets = [0, 0], sizes = [1, 96], strides = [1, 1]} : vector<8x128xf32> to vector<1x96xf32>
    %4 = vector.extract_strided_slice %2 {offsets = [1, 0], sizes = [1, 128], strides = [1, 1]} : vector<8x128xf32> to vector<1x128xf32>
    %5 = vector.extract_strided_slice %2 {offsets = [2, 0], sizes = [1, 32], strides = [1, 1]} : vector<8x128xf32> to vector<1x32xf32>
    %6 = vector.extract_strided_slice %2 {offsets = [3, 0], sizes = [1, 32], strides = [1, 1]} : vector<8x128xf32> to vector<1x32xf32>
    %7 = vector.extract_strided_slice %2 {offsets = [4, 0], sizes = [1, 32], strides = [1, 1]} : vector<8x128xf32> to vector<1x32xf32>
    %8 = vector.extract_strided_slice %2 {offsets = [5, 0], sizes = [1, 32], strides = [1, 1]} : vector<8x128xf32> to vector<1x32xf32>
    %9 = vector.extract_strided_slice %2 {offsets = [6, 0], sizes = [1, 32], strides = [1, 1]} : vector<8x128xf32> to vector<1x32xf32>
    %10 = vector.extract_strided_slice %2 {offsets = [7, 0], sizes = [1, 32], strides = [1, 1]} : vector<8x128xf32> to vector<1x32xf32>
    %c0_4 = arith.constant 0 : index
    %c0_5 = arith.constant 0 : index
    %11 = vector.load %arg1[%c0_4, %c0_5] : memref<32x96xf32, #tpu.memory_space<vmem>>, vector<32x96xf32>
    %cst = arith.constant dense<0.000000e+00> : vector<16x96xf32>
    %12 = tpu.matmul %1, %11, %cst {dimension_numbers = #tpu.dot_dimension_numbers<[1], [0], [0], [1], [0, 0, 1, 1], [], []>} : vector<16x32xf32>, vector<32x96xf32>, vector<16x96xf32> -> vector<16x96xf32>
    %13 = vector.broadcast %3 : vector<1x96xf32> to vector<16x96xf32>
    %14 = arith.addf %12, %13 : vector<16x96xf32>
    %c0_6 = arith.constant 0 : index
    %c0_7 = arith.constant 0 : index
    %15 = vector.load %arg2[%c0_6, %c0_7] : memref<32x32xf32, #tpu.memory_space<vmem>>, vector<32x32xf32>
    %cst_8 = arith.constant 0.000000e+00 : f32
    %16 = vector.broadcast %cst_8 : f32 to vector<16x32xf32>
    %17 = vector.extract_strided_slice %14 {offsets = [0, 0], sizes = [16, 8], strides = [1, 1]} : vector<16x96xf32> to vector<16x8xf32>
    %18 = vector.shape_cast %17 : vector<16x8xf32> to vector<2x8x8xf32>
    %19 = vector.extract_strided_slice %14 {offsets = [0, 32], sizes = [16, 8], strides = [1, 1]} : vector<16x96xf32> to vector<16x8xf32>
    %20 = vector.shape_cast %19 : vector<16x8xf32> to vector<2x8x8xf32>
    %21 = vector.extract_strided_slice %14 {offsets = [0, 64], sizes = [16, 8], strides = [1, 1]} : vector<16x96xf32> to vector<16x8xf32>
    %22 = vector.shape_cast %21 : vector<16x8xf32> to vector<2x8x8xf32>
    "tpu.trace_start"() <{level = 10 : i32, message = "bqe,bke->bqk"}> : () -> ()
    %cst_9 = arith.constant dense<0.000000e+00> : vector<2x8x8xf32>
    %23 = tpu.matmul %18, %20, %cst_9 {dimension_numbers = #tpu.dot_dimension_numbers<[2], [2], [1], [1], [0, 0, 0, 1, 1, 1], [0], [0]>} : vector<2x8x8xf32>, vector<2x8x8xf32>, vector<2x8x8xf32> -> vector<2x8x8xf32>
    "tpu.trace_stop"() : () -> ()
    %cst_10 = arith.constant 0.353553385 : f32
    %24 = vector.broadcast %cst_10 : f32 to vector<2x8x8xf32>
    %25 = arith.mulf %23, %24 : vector<2x8x8xf32>
    %cst_11 = arith.constant dense<0xFF800000> : vector<2x8xf32>
    %26 = vector.multi_reduction <maximumf>, %25, %cst_11 [2] : vector<2x8x8xf32> to vector<2x8xf32>
    %27 = vector.shape_cast %26 : vector<2x8xf32> to vector<2x8x1xf32>
    %28 = vector.broadcast %27 : vector<2x8x1xf32> to vector<2x8x8xf32>
    %29 = arith.subf %25, %28 : vector<2x8x8xf32>
    %30 = math.exp %29 : vector<2x8x8xf32>
    %cst_12 = arith.constant dense<0.000000e+00> : vector<2x8xf32>
    %31 = vector.multi_reduction <add>, %30, %cst_12 [2] : vector<2x8x8xf32> to vector<2x8xf32>
    %32 = vector.shape_cast %31 : vector<2x8xf32> to vector<2x8x1xf32>
    %33 = vector.broadcast %32 : vector<2x8x1xf32> to vector<2x8x8xf32>
    %34 = arith.divf %30, %33 : vector<2x8x8xf32>
    "tpu.trace_start"() <{level = 10 : i32, message = "bqk,bke->bqe"}> : () -> ()
    %cst_13 = arith.constant dense<0.000000e+00> : vector<2x8x8xf32>
    %35 = tpu.matmul %34, %22, %cst_13 {dimension_numbers = #tpu.dot_dimension_numbers<[2], [1], [1], [2], [0, 0, 0, 1, 1, 2], [0], [0]>} : vector<2x8x8xf32>, vector<2x8x8xf32>, vector<2x8x8xf32> -> vector<2x8x8xf32>
    "tpu.trace_stop"() : () -> ()
    %36 = vector.shape_cast %35 : vector<2x8x8xf32> to vector<16x8xf32>
    %37 = vector.extract_strided_slice %15 {offsets = [0, 0], sizes = [8, 32], strides = [1, 1]} : vector<32x32xf32> to vector<8x32xf32>
    %cst_14 = arith.constant dense<0.000000e+00> : vector<16x32xf32>
    %38 = tpu.matmul %36, %37, %cst_14 {dimension_numbers = #tpu.dot_dimension_numbers<[1], [0], [0], [1], [0, 0, 1, 1], [], []>} : vector<16x8xf32>, vector<8x32xf32>, vector<16x32xf32> -> vector<16x32xf32>
    %39 = arith.addf %16, %38 : vector<16x32xf32>
    %40 = vector.extract_strided_slice %14 {offsets = [0, 8], sizes = [16, 8], strides = [1, 1]} : vector<16x96xf32> to vector<16x8xf32>
    %41 = vector.shape_cast %40 : vector<16x8xf32> to vector<2x8x8xf32>
    %42 = vector.extract_strided_slice %14 {offsets = [0, 40], sizes = [16, 8], strides = [1, 1]} : vector<16x96xf32> to vector<16x8xf32>
    %43 = vector.shape_cast %42 : vector<16x8xf32> to vector<2x8x8xf32>
    %44 = vector.extract_strided_slice %14 {offsets = [0, 72], sizes = [16, 8], strides = [1, 1]} : vector<16x96xf32> to vector<16x8xf32>
    %45 = vector.shape_cast %44 : vector<16x8xf32> to vector<2x8x8xf32>
    "tpu.trace_start"() <{level = 10 : i32, message = "bqe,bke->bqk"}> : () -> ()
    %cst_15 = arith.constant dense<0.000000e+00> : vector<2x8x8xf32>
    %46 = tpu.matmul %41, %43, %cst_15 {dimension_numbers = #tpu.dot_dimension_numbers<[2], [2], [1], [1], [0, 0, 0, 1, 1, 1], [0], [0]>} : vector<2x8x8xf32>, vector<2x8x8xf32>, vector<2x8x8xf32> -> vector<2x8x8xf32>
    "tpu.trace_stop"() : () -> ()
    %cst_16 = arith.constant 0.353553385 : f32
    %47 = vector.broadcast %cst_16 : f32 to vector<2x8x8xf32>
    %48 = arith.mulf %46, %47 : vector<2x8x8xf32>
    %cst_17 = arith.constant dense<0xFF800000> : vector<2x8xf32>
    %49 = vector.multi_reduction <maximumf>, %48, %cst_17 [2] : vector<2x8x8xf32> to vector<2x8xf32>
    %50 = vector.shape_cast %49 : vector<2x8xf32> to vector<2x8x1xf32>
    %51 = vector.broadcast %50 : vector<2x8x1xf32> to vector<2x8x8xf32>
    %52 = arith.subf %48, %51 : vector<2x8x8xf32>
    %53 = math.exp %52 : vector<2x8x8xf32>
    %cst_18 = arith.constant dense<0.000000e+00> : vector<2x8xf32>
    %54 = vector.multi_reduction <add>, %53, %cst_18 [2] : vector<2x8x8xf32> to vector<2x8xf32>
    %55 = vector.shape_cast %54 : vector<2x8xf32> to vector<2x8x1xf32>
    %56 = vector.broadcast %55 : vector<2x8x1xf32> to vector<2x8x8xf32>
    %57 = arith.divf %53, %56 : vector<2x8x8xf32>
    "tpu.trace_start"() <{level = 10 : i32, message = "bqk,bke->bqe"}> : () -> ()
    %cst_19 = arith.constant dense<0.000000e+00> : vector<2x8x8xf32>
    %58 = tpu.matmul %57, %45, %cst_19 {dimension_numbers = #tpu.dot_dimension_numbers<[2], [1], [1], [2], [0, 0, 0, 1, 1, 2], [0], [0]>} : vector<2x8x8xf32>, vector<2x8x8xf32>, vector<2x8x8xf32> -> vector<2x8x8xf32>
    "tpu.trace_stop"() : () -> ()
    %59 = vector.shape_cast %58 : vector<2x8x8xf32> to vector<16x8xf32>
    %60 = vector.extract_strided_slice %15 {offsets = [8, 0], sizes = [8, 32], strides = [1, 1]} : vector<32x32xf32> to vector<8x32xf32>
    %cst_20 = arith.constant dense<0.000000e+00> : vector<16x32xf32>
    %61 = tpu.matmul %59, %60, %cst_20 {dimension_numbers = #tpu.dot_dimension_numbers<[1], [0], [0], [1], [0, 0, 1, 1], [], []>} : vector<16x8xf32>, vector<8x32xf32>, vector<16x32xf32> -> vector<16x32xf32>
    %62 = arith.addf %39, %61 : vector<16x32xf32>
    %63 = vector.extract_strided_slice %14 {offsets = [0, 16], sizes = [16, 8], strides = [1, 1]} : vector<16x96xf32> to vector<16x8xf32>
    %64 = vector.shape_cast %63 : vector<16x8xf32> to vector<2x8x8xf32>
    %65 = vector.extract_strided_slice %14 {offsets = [0, 48], sizes = [16, 8], strides = [1, 1]} : vector<16x96xf32> to vector<16x8xf32>
    %66 = vector.shape_cast %65 : vector<16x8xf32> to vector<2x8x8xf32>
    %67 = vector.extract_strided_slice %14 {offsets = [0, 80], sizes = [16, 8], strides = [1, 1]} : vector<16x96xf32> to vector<16x8xf32>
    %68 = vector.shape_cast %67 : vector<16x8xf32> to vector<2x8x8xf32>
    "tpu.trace_start"() <{level = 10 : i32, message = "bqe,bke->bqk"}> : () -> ()
    %cst_21 = arith.constant dense<0.000000e+00> : vector<2x8x8xf32>
    %69 = tpu.matmul %64, %66, %cst_21 {dimension_numbers = #tpu.dot_dimension_numbers<[2], [2], [1], [1], [0, 0, 0, 1, 1, 1], [0], [0]>} : vector<2x8x8xf32>, vector<2x8x8xf32>, vector<2x8x8xf32> -> vector<2x8x8xf32>
    "tpu.trace_stop"() : () -> ()
    %cst_22 = arith.constant 0.353553385 : f32
    %70 = vector.broadcast %cst_22 : f32 to vector<2x8x8xf32>
    %71 = arith.mulf %69, %70 : vector<2x8x8xf32>
    %cst_23 = arith.constant dense<0xFF800000> : vector<2x8xf32>
    %72 = vector.multi_reduction <maximumf>, %71, %cst_23 [2] : vector<2x8x8xf32> to vector<2x8xf32>
    %73 = vector.shape_cast %72 : vector<2x8xf32> to vector<2x8x1xf32>
    %74 = vector.broadcast %73 : vector<2x8x1xf32> to vector<2x8x8xf32>
    %75 = arith.subf %71, %74 : vector<2x8x8xf32>
    %76 = math.exp %75 : vector<2x8x8xf32>
    %cst_24 = arith.constant dense<0.000000e+00> : vector<2x8xf32>
    %77 = vector.multi_reduction <add>, %76, %cst_24 [2] : vector<2x8x8xf32> to vector<2x8xf32>
    %78 = vector.shape_cast %77 : vector<2x8xf32> to vector<2x8x1xf32>
    %79 = vector.broadcast %78 : vector<2x8x1xf32> to vector<2x8x8xf32>
    %80 = arith.divf %76, %79 : vector<2x8x8xf32>
    "tpu.trace_start"() <{level = 10 : i32, message = "bqk,bke->bqe"}> : () -> ()
    %cst_25 = arith.constant dense<0.000000e+00> : vector<2x8x8xf32>
    %81 = tpu.matmul %80, %68, %cst_25 {dimension_numbers = #tpu.dot_dimension_numbers<[2], [1], [1], [2], [0, 0, 0, 1, 1, 2], [0], [0]>} : vector<2x8x8xf32>, vector<2x8x8xf32>, vector<2x8x8xf32> -> vector<2x8x8xf32>
    "tpu.trace_stop"() : () -> ()
    %82 = vector.shape_cast %81 : vector<2x8x8xf32> to vector<16x8xf32>
    %83 = vector.extract_strided_slice %15 {offsets = [16, 0], sizes = [8, 32], strides = [1, 1]} : vector<32x32xf32> to vector<8x32xf32>
    %cst_26 = arith.constant dense<0.000000e+00> : vector<16x32xf32>
    %84 = tpu.matmul %82, %83, %cst_26 {dimension_numbers = #tpu.dot_dimension_numbers<[1], [0], [0], [1], [0, 0, 1, 1], [], []>} : vector<16x8xf32>, vector<8x32xf32>, vector<16x32xf32> -> vector<16x32xf32>
    %85 = arith.addf %62, %84 : vector<16x32xf32>
    %86 = vector.extract_strided_slice %14 {offsets = [0, 24], sizes = [16, 8], strides = [1, 1]} : vector<16x96xf32> to vector<16x8xf32>
    %87 = vector.shape_cast %86 : vector<16x8xf32> to vector<2x8x8xf32>
    %88 = vector.extract_strided_slice %14 {offsets = [0, 56], sizes = [16, 8], strides = [1, 1]} : vector<16x96xf32> to vector<16x8xf32>
    %89 = vector.shape_cast %88 : vector<16x8xf32> to vector<2x8x8xf32>
    %90 = vector.extract_strided_slice %14 {offsets = [0, 88], sizes = [16, 8], strides = [1, 1]} : vector<16x96xf32> to vector<16x8xf32>
    %91 = vector.shape_cast %90 : vector<16x8xf32> to vector<2x8x8xf32>
    "tpu.trace_start"() <{level = 10 : i32, message = "bqe,bke->bqk"}> : () -> ()
    %cst_27 = arith.constant dense<0.000000e+00> : vector<2x8x8xf32>
    %92 = tpu.matmul %87, %89, %cst_27 {dimension_numbers = #tpu.dot_dimension_numbers<[2], [2], [1], [1], [0, 0, 0, 1, 1, 1], [0], [0]>} : vector<2x8x8xf32>, vector<2x8x8xf32>, vector<2x8x8xf32> -> vector<2x8x8xf32>
    "tpu.trace_stop"() : () -> ()
    %cst_28 = arith.constant 0.353553385 : f32
    %93 = vector.broadcast %cst_28 : f32 to vector<2x8x8xf32>
    %94 = arith.mulf %92, %93 : vector<2x8x8xf32>
    %cst_29 = arith.constant dense<0xFF800000> : vector<2x8xf32>
    %95 = vector.multi_reduction <maximumf>, %94, %cst_29 [2] : vector<2x8x8xf32> to vector<2x8xf32>
    %96 = vector.shape_cast %95 : vector<2x8xf32> to vector<2x8x1xf32>
    %97 = vector.broadcast %96 : vector<2x8x1xf32> to vector<2x8x8xf32>
    %98 = arith.subf %94, %97 : vector<2x8x8xf32>
    %99 = math.exp %98 : vector<2x8x8xf32>
    %cst_30 = arith.constant dense<0.000000e+00> : vector<2x8xf32>
    %100 = vector.multi_reduction <add>, %99, %cst_30 [2] : vector<2x8x8xf32> to vector<2x8xf32>
    %101 = vector.shape_cast %100 : vector<2x8xf32> to vector<2x8x1xf32>
    %102 = vector.broadcast %101 : vector<2x8x1xf32> to vector<2x8x8xf32>
    %103 = arith.divf %99, %102 : vector<2x8x8xf32>
    "tpu.trace_start"() <{level = 10 : i32, message = "bqk,bke->bqe"}> : () -> ()
    %cst_31 = arith.constant dense<0.000000e+00> : vector<2x8x8xf32>
    %104 = tpu.matmul %103, %91, %cst_31 {dimension_numbers = #tpu.dot_dimension_numbers<[2], [1], [1], [2], [0, 0, 0, 1, 1, 2], [0], [0]>} : vector<2x8x8xf32>, vector<2x8x8xf32>, vector<2x8x8xf32> -> vector<2x8x8xf32>
    "tpu.trace_stop"() : () -> ()
    %105 = vector.shape_cast %104 : vector<2x8x8xf32> to vector<16x8xf32>
    %106 = vector.extract_strided_slice %15 {offsets = [24, 0], sizes = [8, 32], strides = [1, 1]} : vector<32x32xf32> to vector<8x32xf32>
    %cst_32 = arith.constant dense<0.000000e+00> : vector<16x32xf32>
    %107 = tpu.matmul %105, %106, %cst_32 {dimension_numbers = #tpu.dot_dimension_numbers<[1], [0], [0], [1], [0, 0, 1, 1], [], []>} : vector<16x8xf32>, vector<8x32xf32>, vector<16x32xf32> -> vector<16x32xf32>
    %108 = arith.addf %85, %107 : vector<16x32xf32>
    %109 = vector.broadcast %5 : vector<1x32xf32> to vector<16x32xf32>
    %110 = arith.addf %108, %109 : vector<16x32xf32>
    %111 = arith.addf %1, %110 : vector<16x32xf32>
    %cst_33 = arith.constant dense<0.000000e+00> : vector<16xf32>
    %112 = vector.multi_reduction <add>, %111, %cst_33 [1] : vector<16x32xf32> to vector<16xf32>
    %113 = vector.shape_cast %112 : vector<16xf32> to vector<16x1xf32>
    %cst_34 = arith.constant 3.200000e+01 : f32
    %114 = vector.broadcast %cst_34 : f32 to vector<16x1xf32>
    %115 = arith.divf %113, %114 : vector<16x1xf32>
    %116 = arith.mulf %111, %111 : vector<16x32xf32>
    %cst_35 = arith.constant dense<0.000000e+00> : vector<16xf32>
    %117 = vector.multi_reduction <add>, %116, %cst_35 [1] : vector<16x32xf32> to vector<16xf32>
    %118 = vector.shape_cast %117 : vector<16xf32> to vector<16x1xf32>
    %cst_36 = arith.constant 3.200000e+01 : f32
    %119 = vector.broadcast %cst_36 : f32 to vector<16x1xf32>
    %120 = arith.divf %118, %119 : vector<16x1xf32>
    %121 = arith.mulf %115, %115 : vector<16x1xf32>
    %122 = arith.subf %120, %121 : vector<16x1xf32>
    %123 = vector.broadcast %115 : vector<16x1xf32> to vector<16x32xf32>
    %124 = arith.subf %111, %123 : vector<16x32xf32>
    %cst_37 = arith.constant 9.99999974E-6 : f32
    %125 = vector.broadcast %cst_37 : f32 to vector<16x1xf32>
    %126 = arith.addf %122, %125 : vector<16x1xf32>
    %127 = math.rsqrt %126 : vector<16x1xf32>
    %128 = vector.broadcast %127 : vector<16x1xf32> to vector<16x32xf32>
    %129 = arith.mulf %124, %128 : vector<16x32xf32>
    %130 = vector.broadcast %6 : vector<1x32xf32> to vector<16x32xf32>
    %131 = arith.mulf %129, %130 : vector<16x32xf32>
    %132 = vector.broadcast %7 : vector<1x32xf32> to vector<16x32xf32>
    %133 = arith.addf %131, %132 : vector<16x32xf32>
    %c0_38 = arith.constant 0 : index
    %c0_39 = arith.constant 0 : index
    %134 = vector.load %arg3[%c0_38, %c0_39] : memref<32x128xf32, #tpu.memory_space<vmem>>, vector<32x128xf32>
    %cst_40 = arith.constant dense<0.000000e+00> : vector<16x128xf32>
    %135 = tpu.matmul %133, %134, %cst_40 {dimension_numbers = #tpu.dot_dimension_numbers<[1], [0], [0], [1], [0, 0, 1, 1], [], []>} : vector<16x32xf32>, vector<32x128xf32>, vector<16x128xf32> -> vector<16x128xf32>
    %136 = vector.broadcast %4 : vector<1x128xf32> to vector<16x128xf32>
    %137 = arith.addf %135, %136 : vector<16x128xf32>
    %cst_41 = arith.constant 0.000000e+00 : f32
    %138 = vector.broadcast %cst_41 : f32 to vector<16x128xf32>
    %139 = arith.maximumf %137, %138 : vector<16x128xf32>
    %c0_42 = arith.constant 0 : index
    %c0_43 = arith.constant 0 : index
    %140 = vector.load %arg4[%c0_42, %c0_43] : memref<128x32xf32, #tpu.memory_space<vmem>>, vector<128x32xf32>
    %cst_44 = arith.constant dense<0.000000e+00> : vector<16x32xf32>
    %141 = tpu.matmul %139, %140, %cst_44 {dimension_numbers = #tpu.dot_dimension_numbers<[1], [0], [0], [1], [0, 0, 1, 1], [], []>} : vector<16x128xf32>, vector<128x32xf32>, vector<16x32xf32> -> vector<16x32xf32>
    %142 = vector.broadcast %8 : vector<1x32xf32> to vector<16x32xf32>
    %143 = arith.addf %141, %142 : vector<16x32xf32>
    %144 = arith.addf %133, %143 : vector<16x32xf32>
    %cst_45 = arith.constant dense<0.000000e+00> : vector<16xf32>
    %145 = vector.multi_reduction <add>, %144, %cst_45 [1] : vector<16x32xf32> to vector<16xf32>
    %146 = vector.shape_cast %145 : vector<16xf32> to vector<16x1xf32>
    %cst_46 = arith.constant 3.200000e+01 : f32
    %147 = vector.broadcast %cst_46 : f32 to vector<16x1xf32>
    %148 = arith.divf %146, %147 : vector<16x1xf32>
    %149 = arith.mulf %144, %144 : vector<16x32xf32>
    %cst_47 = arith.constant dense<0.000000e+00> : vector<16xf32>
    %150 = vector.multi_reduction <add>, %149, %cst_47 [1] : vector<16x32xf32> to vector<16xf32>
    %151 = vector.shape_cast %150 : vector<16xf32> to vector<16x1xf32>
    %cst_48 = arith.constant 3.200000e+01 : f32
    %152 = vector.broadcast %cst_48 : f32 to vector<16x1xf32>
    %153 = arith.divf %151, %152 : vector<16x1xf32>
    %154 = arith.mulf %148, %148 : vector<16x1xf32>
    %155 = arith.subf %153, %154 : vector<16x1xf32>
    %156 = vector.broadcast %148 : vector<16x1xf32> to vector<16x32xf32>
    %157 = arith.subf %144, %156 : vector<16x32xf32>
    %cst_49 = arith.constant 9.99999974E-6 : f32
    %158 = vector.broadcast %cst_49 : f32 to vector<16x1xf32>
    %159 = arith.addf %155, %158 : vector<16x1xf32>
    %160 = math.rsqrt %159 : vector<16x1xf32>
    %161 = vector.broadcast %160 : vector<16x1xf32> to vector<16x32xf32>
    %162 = arith.mulf %157, %161 : vector<16x32xf32>
    %163 = vector.broadcast %9 : vector<1x32xf32> to vector<16x32xf32>
    %164 = arith.mulf %162, %163 : vector<16x32xf32>
    %165 = vector.broadcast %10 : vector<1x32xf32> to vector<16x32xf32>
    %166 = arith.addf %164, %165 : vector<16x32xf32>
    %167 = vector.shape_cast %166 : vector<16x32xf32> to vector<2x8x32xf32>
    %c0_50 = arith.constant 0 : index
    %c0_51 = arith.constant 0 : index
    %c0_52 = arith.constant 0 : index
    %168 = vector.load %arg6[%c0_50, %c0_51, %c0_52] : memref<2x8x32xf32, #tpu.memory_space<vmem>>, vector<2x8x32xf32>
    tpu.vector_store %arg6[%c0_50, %c0_51, %c0_52], %167 {strides = array<i32>} : memref<2x8x32xf32, #tpu.memory_space<vmem>>, vector<2x8x32xf32>,
    return
  }
}

</mosaic_0001>

<llo_original>
// kernel: eblock_forward.1
$region0: #{eblock_forward.1}
  #allocation0 [shape = 'u32[]', space=smem, size = 0x4, offset = 0x4, fixed_abs, tag = 'smem constant byte address 0x4 - core index']
  #allocation1 [shape = 'u32[72,128]{1,0:T(1,128)}', space=vmem, size = 0x9000, scoped, tag = 'internal scratch']
  %s0 = inlined_call_operand.vmem [shape: f32[2,8,32], index: 0, kind: input, shape index: {}]
  %s1 = inlined_call_operand.vmem [shape: f32[32,96], index: 1, kind: input, shape index: {}]
  %s2 = inlined_call_operand.vmem [shape: f32[32,32], index: 2, kind: input, shape index: {}]
  %s3 = inlined_call_operand.vmem [shape: f32[32,128], index: 3, kind: input, shape index: {}]
  %s4 = inlined_call_operand.vmem [shape: f32[128,32], index: 4, kind: input, shape index: {}]
  %s5 = inlined_call_operand.vmem [shape: f32[8,128], index: 5, kind: input, shape index: {}]
  %s6 = inlined_call_operand.hbm [shape: f32[2,8,32], index: 6, kind: output, shape index: {}]
  %s7 = sld [smem:[#allocation0]]
  $region34: #{eblock_forward.1} parent=0
    _
  %s9 = ssub.s32 1, %s7
  %s10 = scalar_select 0, %s9, %s7
  $region1: #{eblock_forward.1} parent=0
    #allocation2 [shape = 'u8[8192]{0}', space=vmem, size = 0x2000, scoped, tag = 'output window, operand 0, single buffered']
    #allocation3 [shape = 's32[1]{0}', space=sflag, size = 0x4, scoped, tag = 'scoped memory for eblock_forward.1']
    %11 = vsyncpa [#allocation3], 0
    // Predicated region
    $region2: #{eblock_forward.1} parent=1 // pred_check
      _
    $region3: #{eblock_forward.1} parent=1 // pred_check_branch
      %13 = sbr.rel (0) target = $region5
    $region4: #{eblock_forward.1} parent=1 // pred_region
      _
    $region5: #{eblock_forward.1} parent=1 // pred_fallthru
      _
    // Predicated region
    $region6: #{eblock_forward.1} parent=1 // pred_check
      _
    $region7: #{eblock_forward.1} parent=1 // pred_check_branch
      %15 = sbr.rel (0) target = $region9
    $region8: #{eblock_forward.1} parent=1 // pred_region
      _
    $region9: #{eblock_forward.1} parent=1 // pred_fallthru
      _
    // Predicated region
    $region10: #{eblock_forward.1} parent=1 // pred_check
      _
    $region11: #{eblock_forward.1} parent=1 // pred_check_branch
      %17 = sbr.rel (0) target = $region13
    $region12: #{eblock_forward.1} parent=1 // pred_region
      _
    $region13: #{eblock_forward.1} parent=1 // pred_fallthru
      _
    // Predicated region
    $region14: #{eblock_forward.1} parent=1 // pred_check
      _
    $region15: #{eblock_forward.1} parent=1 // pred_check_branch
      %19 = sbr.rel (0) target = $region17
    $region16: #{eblock_forward.1} parent=1 // pred_region
      _
    $region17: #{eblock_forward.1} parent=1 // pred_fallthru
      _
    // Predicated region
    $region18: #{eblock_forward.1} parent=1 // pred_check
      _
    $region19: #{eblock_forward.1} parent=1 // pred_check_branch
      %21 = sbr.rel (0) target = $region21
    $region20: #{eblock_forward.1} parent=1 // pred_region
      _
    $region21: #{eblock_forward.1} parent=1 // pred_fallthru
      _
    // Predicated region
    $region22: #{eblock_forward.1} parent=1 // pred_check
      _
    $region23: #{eblock_forward.1} parent=1 // pred_check_branch
      %23 = sbr.rel (0) target = $region25
    $region24: #{eblock_forward.1} parent=1 // pred_region
      _
    $region25: #{eblock_forward.1} parent=1 // pred_fallthru
      _
    %v24 = vld [vmem:[%s0] sm:$0xff]
    %v25 = vld [vmem:[%s0 + $0x8] sm:$0xff]
    %v26 = vld [vmem:[%s5] sm:$0xff]
    %v27 = vld [vmem:[%s1] sm:$0xff]
    %v28 = vld [vmem:[%s1 + $0x8] sm:$0xff]
    %v29 = vld [vmem:[%s1 + $0x10] sm:$0xff]
    %v30 = vld [vmem:[%s1 + $0x18] sm:$0xff]
    %v31 = vperm.slane %v26, 0
    %vm32 = vcmask 261120
    %v34 = vsel %vm32, %v24, 0
    %v37 = vsel %vm32, %v25, 0
    %39 = vmatpush.msra.mxu0 0.0
    %40 = vmatpush.msra.mxu0 0.0
    %41 = vmatpush.msra.mxu0 0.0
    %42 = vmatpush.msra.mxu0 0.0
    %43 = vmatpush.msra.mxu0 0.0
    %44 = vmatpush.msra.mxu0 0.0
    %45 = vmatpush.msra.mxu0 0.0
    %46 = vmatpush.msra.mxu0 0.0
    %47 = vmatpush.msra.mxu0 0.0
    %48 = vmatpush.msra.mxu0 0.0
    %49 = vmatpush.msra.mxu0 0.0
    %50 = vmatpush.msra.mxu0 0.0
    %51 = vmatpush.msra.mxu0 %v30
    %52 = vmatpush.msra.mxu0 %v29
    %53 = vmatpush.msra.mxu0 %v28
    %54 = vmatpush.msra.mxu0 %v27
    %55 = vmatmul.f32.gmra.mxu0 %v34
    %v56 = vpop.f32.mrf.mxu0
    %v57 = vadd.f32 %v31, %v56
    %58 = vmatmul.f32.gmra.mxu0 %v37
    %v59 = vpop.f32.mrf.mxu0
    %v60 = vadd.f32 %v31, %v59
    %61 = vdwg.mxu0
    %v62 = vld [vmem:[%s2] sm:$0xff]
    %v63 = vld [vmem:[%s2 + $0x8] sm:$0xff]
    %v64 = vld [vmem:[%s2 + $0x10] sm:$0xff]
    %v65 = vld [vmem:[%s2 + $0x18] sm:$0xff]
    %67 = vrot.lane.b32.xlu0 %v57, 96
    %v68 = vpop.permute.xlu0 %67
    %vm69 = vcmask 64512
    %v70 = vsel %vm69, %v57, 0
    %v72 = vsel %vm69, %v68, 0
    %74 = vmatpush.xpose.msra.mxu0 0.0
    %75 = vmatpush.xpose.msra.mxu0 0.0
    %76 = vmatpush.xpose.msra.mxu0 0.0
    %77 = vmatpush.xpose.msra.mxu0 0.0
    %78 = vmatpush.xpose.msra.mxu0 0.0
    %79 = vmatpush.xpose.msra.mxu0 0.0
    %80 = vmatpush.xpose.msra.mxu0 0.0
    %81 = vmatpush.xpose.msra.mxu0 0.0
    %82 = vmatpush.xpose.msra.mxu0 0.0
    %83 = vmatpush.xpose.msra.mxu0 0.0
    %84 = vmatpush.xpose.msra.mxu0 0.0
    %85 = vmatpush.xpose.msra.mxu0 0.0
    %86 = vmatpush.xpose.msra.mxu0 0.0
    %87 = vmatpush.xpose.msra.mxu0 0.0
    %88 = vmatpush.xpose.msra.mxu0 0.0
    %89 = vmatpush.xpose.msra.mxu0 %v72
    %90 = vmatmul.f32.gmra.mxu0 %v70
    %v91 = vpop.f32.mrf.mxu0
    %v92 = vadd.f32 0.0, %v91
    %93 = vdwg.mxu0
    %95 = vrot.lane.b32.xlu0 %v60, 96
    %v96 = vpop.permute.xlu0 %95
    %v97 = vsel %vm69, %v60, 0
    %v99 = vsel %vm69, %v96, 0
    %101 = vmatpush.xpose.msra.mxu0 0.0
    %102 = vmatpush.xpose.msra.mxu0 0.0
    %103 = vmatpush.xpose.msra.mxu0 0.0
    %104 = vmatpush.xpose.msra.mxu0 0.0
    %105 = vmatpush.xpose.msra.mxu0 0.0
    %106 = vmatpush.xpose.msra.mxu0 0.0
    %107 = vmatpush.xpose.msra.mxu0 0.0
    %108 = vmatpush.xpose.msra.mxu0 0.0
    %109 = vmatpush.xpose.msra.mxu0 0.0
    %110 = vmatpush.xpose.msra.mxu0 0.0
    %111 = vmatpush.xpose.msra.mxu0 0.0
    %112 = vmatpush.xpose.msra.mxu0 0.0
    %113 = vmatpush.xpose.msra.mxu0 0.0
    %114 = vmatpush.xpose.msra.mxu0 0.0
    %115 = vmatpush.xpose.msra.mxu0 0.0
    %116 = vmatpush.xpose.msra.mxu0 %v99
    %117 = vmatmul.f32.gmra.mxu0 %v97
    %v118 = vpop.f32.mrf.mxu0
    %v119 = vadd.f32 0.0, %v118
    %120 = vdwg.mxu0
    %v121 = vmul.f32 %v92, 0.35355338
    %v122 = vmul.f32 %v119, 0.35355338
    %v123 = vsel %vm69, %v121, -inf
    %124 = vmax.xlane.f32.xlu0 %v123
    %v125 = vpop.xlane.xlu0 %124
    %v126 = vsel %vm69, %v122, -inf
    %127 = vmax.xlane.f32.xlu0 %v126
    %v128 = vpop.xlane.xlu0 %127
    %v129 = vsub.f32 %v121, %v125
    %v130 = vsub.f32 %v122, %v128
    %v131 = vmul.f32 %v129, 1.442695
    %v132 = vpow.pop %v131
    %v133 = vmul.f32 %v130, 1.442695
    %v134 = vpow.pop %v133
    %v135 = vsel %vm69, %v132, 0.0
    %136 = vadd.xlane.f32.xlu0 %v135
    %v137 = vpop.xlane.xlu0 %136
    %v138 = vsel %vm69, %v134, 0.0
    %139 = vadd.xlane.f32.xlu0 %v138
    %v140 = vpop.xlane.xlu0 %139
    %v141 = vrcp.pop %v137
    %v142 = vmul.f32 %v137, %v141
    %v143 = vsub.f32 1.0, %v142
    %v144 = vmul.f32 %v141, %v143
    %v145 = vadd.f32 %v141, %v144
    %vm146 = vweird.f32 %v137
    %vm147 = vweird.f32 %v141
    %vm148 = vmor %vm146, %vm147
    %v149 = vsel %vm148, %v141, %v145
    %v150 = vand.u32 2147483647, %v137
    %vm151 = vcmp.eq.f32.partialorder %v150, 8.507059e+37
    %v152 = vand.u32 %v137, 2147483648
    %v153 = vor.u32 1.1754944e-38, %v152
    %v154 = vsel %vm151, %v153, %v149
    %v155 = vmul.f32 %v132, %v154
    %v156 = vrcp.pop %v140
    %v157 = vmul.f32 %v140, %v156
    %v158 = vsub.f32 1.0, %v157
    %v159 = vmul.f32 %v156, %v158
    %v160 = vadd.f32 %v156, %v159
    %vm161 = vweird.f32 %v140
    %vm162 = vweird.f32 %v156
    %vm163 = vmor %vm161, %vm162
    %v164 = vsel %vm163, %v156, %v160
    %v165 = vand.u32 2147483647, %v140
    %vm166 = vcmp.eq.f32.partialorder %v165, 8.507059e+37
    %v167 = vand.u32 %v140, 2147483648
    %v168 = vor.u32 1.1754944e-38, %v167
    %v169 = vsel %vm166, %v168, %v164
    %v170 = vmul.f32 %v134, %v169
    %171 = vrot.lane.b32.xlu0 %v57, 64
    %v172 = vpop.permute.xlu0 %171
    %v175 = vsel %vm69, %v155, 0
    %177 = vmatpush.msra.mxu0 0.0
    %178 = vmatpush.msra.mxu0 0.0
    %179 = vmatpush.msra.mxu0 0.0
    %180 = vmatpush.msra.mxu0 0.0
    %181 = vmatpush.msra.mxu0 0.0
    %182 = vmatpush.msra.mxu0 0.0
    %183 = vmatpush.msra.mxu0 0.0
    %184 = vmatpush.msra.mxu0 0.0
    %185 = vmatpush.msra.mxu0 0.0
    %186 = vmatpush.msra.mxu0 0.0
    %187 = vmatpush.msra.mxu0 0.0
    %188 = vmatpush.msra.mxu0 0.0
    %189 = vmatpush.msra.mxu0 0.0
    %190 = vmatpush.msra.mxu0 0.0
    %191 = vmatpush.msra.mxu0 0.0
    %192 = vmatpush.msra.mxu0 %v172
    %193 = vmatmul.f32.gmra.mxu0 %v175
    %v194 = vpop.f32.mrf.mxu0
    %v195 = vadd.f32 0.0, %v194
    %196 = vdwg.mxu0
    %197 = vrot.lane.b32.xlu0 %v60, 64
    %v198 = vpop.permute.xlu0 %197
    %v201 = vsel %vm69, %v170, 0
    %203 = vmatpush.msra.mxu0 0.0
    %204 = vmatpush.msra.mxu0 0.0
    %205 = vmatpush.msra.mxu0 0.0
    %206 = vmatpush.msra.mxu0 0.0
    %207 = vmatpush.msra.mxu0 0.0
    %208 = vmatpush.msra.mxu0 0.0
    %209 = vmatpush.msra.mxu0 0.0
    %210 = vmatpush.msra.mxu0 0.0
    %211 = vmatpush.msra.mxu0 0.0
    %212 = vmatpush.msra.mxu0 0.0
    %213 = vmatpush.msra.mxu0 0.0
    %214 = vmatpush.msra.mxu0 0.0
    %215 = vmatpush.msra.mxu0 0.0
    %216 = vmatpush.msra.mxu0 0.0
    %217 = vmatpush.msra.mxu0 0.0
    %218 = vmatpush.msra.mxu0 %v198
    %219 = vmatmul.f32.gmra.mxu0 %v201
    %v220 = vpop.f32.mrf.mxu0
    %v221 = vadd.f32 0.0, %v220
    %222 = vdwg.mxu0
    %223 = vrot.lane.b32.xlu0 %v57, 120
    %v224 = vpop.permute.xlu0 %223
    %225 = vrot.lane.b32.xlu0 %v57, 88
    %v226 = vpop.permute.xlu0 %225
    %v227 = vsel %vm69, %v224, 0
    %v229 = vsel %vm69, %v226, 0
    %231 = vmatpush.xpose.msra.mxu0 0.0
    %232 = vmatpush.xpose.msra.mxu0 0.0
    %233 = vmatpush.xpose.msra.mxu0 0.0
    %234 = vmatpush.xpose.msra.mxu0 0.0
    %235 = vmatpush.xpose.msra.mxu0 0.0
    %236 = vmatpush.xpose.msra.mxu0 0.0
    %237 = vmatpush.xpose.msra.mxu0 0.0
    %238 = vmatpush.xpose.msra.mxu0 0.0
    %239 = vmatpush.xpose.msra.mxu0 0.0
    %240 = vmatpush.xpose.msra.mxu0 0.0
    %241 = vmatpush.xpose.msra.mxu0 0.0
    %242 = vmatpush.xpose.msra.mxu0 0.0
    %243 = vmatpush.xpose.msra.mxu0 0.0
    %244 = vmatpush.xpose.msra.mxu0 0.0
    %245 = vmatpush.xpose.msra.mxu0 0.0
    %246 = vmatpush.xpose.msra.mxu0 %v229
    %247 = vmatmul.f32.gmra.mxu0 %v227
    %v248 = vpop.f32.mrf.mxu0
    %v249 = vadd.f32 0.0, %v248
    %250 = vdwg.mxu0
    %251 = vrot.lane.b32.xlu0 %v60, 120
    %v252 = vpop.permute.xlu0 %251
    %253 = vrot.lane.b32.xlu0 %v60, 88
    %v254 = vpop.permute.xlu0 %253
    %v255 = vsel %vm69, %v252, 0
    %v257 = vsel %vm69, %v254, 0
    %259 = vmatpush.xpose.msra.mxu0 0.0
    %260 = vmatpush.xpose.msra.mxu0 0.0
    %261 = vmatpush.xpose.msra.mxu0 0.0
    %262 = vmatpush.xpose.msra.mxu0 0.0
    %263 = vmatpush.xpose.msra.mxu0 0.0
    %264 = vmatpush.xpose.msra.mxu0 0.0
    %265 = vmatpush.xpose.msra.mxu0 0.0
    %266 = vmatpush.xpose.msra.mxu0 0.0
    %267 = vmatpush.xpose.msra.mxu0 0.0
    %268 = vmatpush.xpose.msra.mxu0 0.0
    %269 = vmatpush.xpose.msra.mxu0 0.0
    %270 = vmatpush.xpose.msra.mxu0 0.0
    %271 = vmatpush.xpose.msra.mxu0 0.0
    %272 = vmatpush.xpose.msra.mxu0 0.0
    %273 = vmatpush.xpose.msra.mxu0 0.0
    %274 = vmatpush.xpose.msra.mxu0 %v257
    %275 = vmatmul.f32.gmra.mxu0 %v255
    %v276 = vpop.f32.mrf.mxu0
    %v277 = vadd.f32 0.0, %v276
    %278 = vdwg.mxu0
    %v279 = vmul.f32 %v249, 0.35355338
    %v280 = vmul.f32 %v277, 0.35355338
    %v281 = vsel %vm69, %v279, -inf
    %282 = vmax.xlane.f32.xlu0 %v281
    %v283 = vpop.xlane.xlu0 %282
    %v284 = vsel %vm69, %v280, -inf
    %285 = vmax.xlane.f32.xlu0 %v284
    %v286 = vpop.xlane.xlu0 %285
    %v287 = vsub.f32 %v279, %v283
    %v288 = vsub.f32 %v280, %v286
    %v289 = vmul.f32 %v287, 1.442695
    %v290 = vpow.pop %v289
    %v291 = vmul.f32 %v288, 1.442695
    %v292 = vpow.pop %v291
    %v293 = vsel %vm69, %v290, 0.0
    %294 = vadd.xlane.f32.xlu0 %v293
    %v295 = vpop.xlane.xlu0 %294
    %v296 = vsel %vm69, %v292, 0.0
    %297 = vadd.xlane.f32.xlu0 %v296
    %v298 = vpop.xlane.xlu0 %297
    %v299 = vrcp.pop %v295
    %v300 = vmul.f32 %v295, %v299
    %v301 = vsub.f32 1.0, %v300
    %v302 = vmul.f32 %v299, %v301
    %v303 = vadd.f32 %v299, %v302
    %vm304 = vweird.f32 %v295
    %vm305 = vweird.f32 %v299
    %vm306 = vmor %vm304, %vm305
    %v307 = vsel %vm306, %v299, %v303
    %v308 = vand.u32 2147483647, %v295
    %vm309 = vcmp.eq.f32.partialorder %v308, 8.507059e+37
    %v310 = vand.u32 %v295, 2147483648
    %v311 = vor.u32 1.1754944e-38, %v310
    %v312 = vsel %vm309, %v311, %v307
    %v313 = vmul.f32 %v290, %v312
    %v314 = vrcp.pop %v298
    %v315 = vmul.f32 %v298, %v314
    %v316 = vsub.f32 1.0, %v315
    %v317 = vmul.f32 %v314, %v316
    %v318 = vadd.f32 %v314, %v317
    %vm319 = vweird.f32 %v298
    %vm320 = vweird.f32 %v314
    %vm321 = vmor %vm319, %vm320
    %v322 = vsel %vm321, %v314, %v318
    %v323 = vand.u32 2147483647, %v298
    %vm324 = vcmp.eq.f32.partialorder %v323, 8.507059e+37
    %v325 = vand.u32 %v298, 2147483648
    %v326 = vor.u32 1.1754944e-38, %v325
    %v327 = vsel %vm324, %v326, %v322
    %v328 = vmul.f32 %v292, %v327
    %329 = vrot.lane.b32.xlu0 %v57, 56
    %v330 = vpop.permute.xlu0 %329
    %v333 = vsel %vm69, %v313, 0
    %335 = vmatpush.msra.mxu0 0.0
    %336 = vmatpush.msra.mxu0 0.0
    %337 = vmatpush.msra.mxu0 0.0
    %338 = vmatpush.msra.mxu0 0.0
    %339 = vmatpush.msra.mxu0 0.0
    %340 = vmatpush.msra.mxu0 0.0
    %341 = vmatpush.msra.mxu0 0.0
    %342 = vmatpush.msra.mxu0 0.0
    %343 = vmatpush.msra.mxu0 0.0
    %344 = vmatpush.msra.mxu0 0.0
    %345 = vmatpush.msra.mxu0 0.0
    %346 = vmatpush.msra.mxu0 0.0
    %347 = vmatpush.msra.mxu0 0.0
    %348 = vmatpush.msra.mxu0 0.0
    %349 = vmatpush.msra.mxu0 0.0
    %350 = vmatpush.msra.mxu0 %v330
    %351 = vmatmul.f32.gmra.mxu0 %v333
    %v352 = vpop.f32.mrf.mxu0
    %v353 = vadd.f32 0.0, %v352
    %354 = vdwg.mxu0
    %355 = vrot.lane.b32.xlu0 %v60, 56
    %v356 = vpop.permute.xlu0 %355
    %v359 = vsel %vm69, %v328, 0
    %361 = vmatpush.msra.mxu0 0.0
    %362 = vmatpush.msra.mxu0 0.0
    %363 = vmatpush.msra.mxu0 0.0
    %364 = vmatpush.msra.mxu0 0.0
    %365 = vmatpush.msra.mxu0 0.0
    %366 = vmatpush.msra.mxu0 0.0
    %367 = vmatpush.msra.mxu0 0.0
    %368 = vmatpush.msra.mxu0 0.0
    %369 = vmatpush.msra.mxu0 0.0
    %370 = vmatpush.msra.mxu0 0.0
    %371 = vmatpush.msra.mxu0 0.0
    %372 = vmatpush.msra.mxu0 0.0
    %373 = vmatpush.msra.mxu0 0.0
    %374 = vmatpush.msra.mxu0 0.0
    %375 = vmatpush.msra.mxu0 0.0
    %376 = vmatpush.msra.mxu0 %v356
    %377 = vmatmul.f32.gmra.mxu0 %v359
    %v378 = vpop.f32.mrf.mxu0
    %v379 = vadd.f32 0.0, %v378
    %380 = vdwg.mxu0
    %v382 = vsel %vm69, %v353, 0
    %v385 = vsel %vm69, %v379, 0
    %387 = vmatpush.msra.mxu0 0.0
    %388 = vmatpush.msra.mxu0 0.0
    %389 = vmatpush.msra.mxu0 0.0
    %390 = vmatpush.msra.mxu0 0.0
    %391 = vmatpush.msra.mxu0 0.0
    %392 = vmatpush.msra.mxu0 0.0
    %393 = vmatpush.msra.mxu0 0.0
    %394 = vmatpush.msra.mxu0 0.0
    %395 = vmatpush.msra.mxu0 0.0
    %396 = vmatpush.msra.mxu0 0.0
    %397 = vmatpush.msra.mxu0 0.0
    %398 = vmatpush.msra.mxu0 0.0
    %399 = vmatpush.msra.mxu0 0.0
    %400 = vmatpush.msra.mxu0 0.0
    %401 = vmatpush.msra.mxu0 0.0
    %402 = vmatpush.msra.mxu0 %v63
    %403 = vmatmul.f32.gmra.mxu0 %v382
    %v404 = vpop.f32.mrf.mxu0
    %v405 = vadd.f32 0.0, %v404
    %406 = vmatmul.f32.gmra.mxu0 %v385
    %v407 = vpop.f32.mrf.mxu0
    %v408 = vadd.f32 0.0, %v407
    %409 = vdwg.mxu0
    %v411 = vsel %vm69, %v195, 0
    %v414 = vsel %vm69, %v221, 0
    %416 = vmatpush.msra.mxu0 0.0
    %417 = vmatpush.msra.mxu0 0.0
    %418 = vmatpush.msra.mxu0 0.0
    %419 = vmatpush.msra.mxu0 0.0
    %420 = vmatpush.msra.mxu0 0.0
    %421 = vmatpush.msra.mxu0 0.0
    %422 = vmatpush.msra.mxu0 0.0
    %423 = vmatpush.msra.mxu0 0.0
    %424 = vmatpush.msra.mxu0 0.0
    %425 = vmatpush.msra.mxu0 0.0
    %426 = vmatpush.msra.mxu0 0.0
    %427 = vmatpush.msra.mxu0 0.0
    %428 = vmatpush.msra.mxu0 0.0
    %429 = vmatpush.msra.mxu0 0.0
    %430 = vmatpush.msra.mxu0 0.0
    %431 = vmatpush.msra.mxu0 %v62
    %432 = vmatmul.f32.gmra.mxu0 %v411
    %v433 = vpop.f32.mrf.mxu0
    %v434 = vadd.f32 %v405, %v433
    %435 = vmatmul.f32.gmra.mxu0 %v414
    %v436 = vpop.f32.mrf.mxu0
    %v437 = vadd.f32 %v408, %v436
    %438 = vdwg.mxu0
    %439 = vrot.lane.b32.xlu0 %v57, 112
    %v440 = vpop.permute.xlu0 %439
    %441 = vrot.lane.b32.xlu0 %v57, 80
    %v442 = vpop.permute.xlu0 %441
    %v443 = vsel %vm69, %v440, 0
    %v445 = vsel %vm69, %v442, 0
    %447 = vmatpush.xpose.msra.mxu0 0.0
    %448 = vmatpush.xpose.msra.mxu0 0.0
    %449 = vmatpush.xpose.msra.mxu0 0.0
    %450 = vmatpush.xpose.msra.mxu0 0.0
    %451 = vmatpush.xpose.msra.mxu0 0.0
    %452 = vmatpush.xpose.msra.mxu0 0.0
    %453 = vmatpush.xpose.msra.mxu0 0.0
    %454 = vmatpush.xpose.msra.mxu0 0.0
    %455 = vmatpush.xpose.msra.mxu0 0.0
    %456 = vmatpush.xpose.msra.mxu0 0.0
    %457 = vmatpush.xpose.msra.mxu0 0.0
    %458 = vmatpush.xpose.msra.mxu0 0.0
    %459 = vmatpush.xpose.msra.mxu0 0.0
    %460 = vmatpush.xpose.msra.mxu0 0.0
    %461 = vmatpush.xpose.msra.mxu0 0.0
    %462 = vmatpush.xpose.msra.mxu0 %v445
    %463 = vmatmul.f32.gmra.mxu0 %v443
    %v464 = vpop.f32.mrf.mxu0
    %v465 = vadd.f32 0.0, %v464
    %466 = vdwg.mxu0
    %467 = vrot.lane.b32.xlu0 %v60, 112
    %v468 = vpop.permute.xlu0 %467
    %469 = vrot.lane.b32.xlu0 %v60, 80
    %v470 = vpop.permute.xlu0 %469
    %v471 = vsel %vm69, %v468, 0
    %v473 = vsel %vm69, %v470, 0
    %475 = vmatpush.xpose.msra.mxu0 0.0
    %476 = vmatpush.xpose.msra.mxu0 0.0
    %477 = vmatpush.xpose.msra.mxu0 0.0
    %478 = vmatpush.xpose.msra.mxu0 0.0
    %479 = vmatpush.xpose.msra.mxu0 0.0
    %480 = vmatpush.xpose.msra.mxu0 0.0
    %481 = vmatpush.xpose.msra.mxu0 0.0
    %482 = vmatpush.xpose.msra.mxu0 0.0
    %483 = vmatpush.xpose.msra.mxu0 0.0
    %484 = vmatpush.xpose.msra.mxu0 0.0
    %485 = vmatpush.xpose.msra.mxu0 0.0
    %486 = vmatpush.xpose.msra.mxu0 0.0
    %487 = vmatpush.xpose.msra.mxu0 0.0
    %488 = vmatpush.xpose.msra.mxu0 0.0
    %489 = vmatpush.xpose.msra.mxu0 0.0
    %490 = vmatpush.xpose.msra.mxu0 %v473
    %491 = vmatmul.f32.gmra.mxu0 %v471
    %v492 = vpop.f32.mrf.mxu0
    %v493 = vadd.f32 0.0, %v492
    %494 = vdwg.mxu0
    %v495 = vmul.f32 %v465, 0.35355338
    %v496 = vmul.f32 %v493, 0.35355338
    %v497 = vsel %vm69, %v495, -inf
    %498 = vmax.xlane.f32.xlu0 %v497
    %v499 = vpop.xlane.xlu0 %498
    %v500 = vsel %vm69, %v496, -inf
    %501 = vmax.xlane.f32.xlu0 %v500
    %v502 = vpop.xlane.xlu0 %501
    %v503 = vsub.f32 %v495, %v499
    %v504 = vsub.f32 %v496, %v502
    %v505 = vmul.f32 %v503, 1.442695
    %v506 = vpow.pop %v505
    %v507 = vmul.f32 %v504, 1.442695
    %v508 = vpow.pop %v507
    %v509 = vsel %vm69, %v506, 0.0
    %510 = vadd.xlane.f32.xlu0 %v509
    %v511 = vpop.xlane.xlu0 %510
    %v512 = vsel %vm69, %v508, 0.0
    %513 = vadd.xlane.f32.xlu0 %v512
    %v514 = vpop.xlane.xlu0 %513
    %v515 = vrcp.pop %v511
    %v516 = vmul.f32 %v511, %v515
    %v517 = vsub.f32 1.0, %v516
    %v518 = vmul.f32 %v515, %v517
    %v519 = vadd.f32 %v515, %v518
    %vm520 = vweird.f32 %v511
    %vm521 = vweird.f32 %v515
    %vm522 = vmor %vm520, %vm521
    %v523 = vsel %vm522, %v515, %v519
    %v524 = vand.u32 2147483647, %v511
    %vm525 = vcmp.eq.f32.partialorder %v524, 8.507059e+37
    %v526 = vand.u32 %v511, 2147483648
    %v527 = vor.u32 1.1754944e-38, %v526
    %v528 = vsel %vm525, %v527, %v523
    %v529 = vmul.f32 %v506, %v528
    %v530 = vrcp.pop %v514
    %v531 = vmul.f32 %v514, %v530
    %v532 = vsub.f32 1.0, %v531
    %v533 = vmul.f32 %v530, %v532
    %v534 = vadd.f32 %v530, %v533
    %vm535 = vweird.f32 %v514
    %vm536 = vweird.f32 %v530
    %vm537 = vmor %vm535, %vm536
    %v538 = vsel %vm537, %v530, %v534
    %v539 = vand.u32 2147483647, %v514
    %vm540 = vcmp.eq.f32.partialorder %v539, 8.507059e+37
    %v541 = vand.u32 %v514, 2147483648
    %v542 = vor.u32 1.1754944e-38, %v541
    %v543 = vsel %vm540, %v542, %v538
    %v544 = vmul.f32 %v508, %v543
    %545 = vrot.lane.b32.xlu0 %v57, 48
    %v546 = vpop.permute.xlu0 %545
    %v549 = vsel %vm69, %v529, 0
    %551 = vmatpush.msra.mxu0 0.0
    %552 = vmatpush.msra.mxu0 0.0
    %553 = vmatpush.msra.mxu0 0.0
    %554 = vmatpush.msra.mxu0 0.0
    %555 = vmatpush.msra.mxu0 0.0
    %556 = vmatpush.msra.mxu0 0.0
    %557 = vmatpush.msra.mxu0 0.0
    %558 = vmatpush.msra.mxu0 0.0
    %559 = vmatpush.msra.mxu0 0.0
    %560 = vmatpush.msra.mxu0 0.0
    %561 = vmatpush.msra.mxu0 0.0
    %562 = vmatpush.msra.mxu0 0.0
    %563 = vmatpush.msra.mxu0 0.0
    %564 = vmatpush.msra.mxu0 0.0
    %565 = vmatpush.msra.mxu0 0.0
    %566 = vmatpush.msra.mxu0 %v546
    %567 = vmatmul.f32.gmra.mxu0 %v549
    %v568 = vpop.f32.mrf.mxu0
    %v569 = vadd.f32 0.0, %v568
    %570 = vdwg.mxu0
    %571 = vrot.lane.b32.xlu0 %v60, 48
    %v572 = vpop.permute.xlu0 %571
    %v575 = vsel %vm69, %v544, 0
    %577 = vmatpush.msra.mxu0 0.0
    %578 = vmatpush.msra.mxu0 0.0
    %579 = vmatpush.msra.mxu0 0.0
    %580 = vmatpush.msra.mxu0 0.0
    %581 = vmatpush.msra.mxu0 0.0
    %582 = vmatpush.msra.mxu0 0.0
    %583 = vmatpush.msra.mxu0 0.0
    %584 = vmatpush.msra.mxu0 0.0
    %585 = vmatpush.msra.mxu0 0.0
    %586 = vmatpush.msra.mxu0 0.0
    %587 = vmatpush.msra.mxu0 0.0
    %588 = vmatpush.msra.mxu0 0.0
    %589 = vmatpush.msra.mxu0 0.0
    %590 = vmatpush.msra.mxu0 0.0
    %591 = vmatpush.msra.mxu0 0.0
    %592 = vmatpush.msra.mxu0 %v572
    %593 = vmatmul.f32.gmra.mxu0 %v575
    %v594 = vpop.f32.mrf.mxu0
    %v595 = vadd.f32 0.0, %v594
    %596 = vdwg.mxu0
    %v598 = vsel %vm69, %v569, 0
    %v601 = vsel %vm69, %v595, 0
    %603 = vmatpush.msra.mxu0 0.0
    %604 = vmatpush.msra.mxu0 0.0
    %605 = vmatpush.msra.mxu0 0.0
    %606 = vmatpush.msra.mxu0 0.0
    %607 = vmatpush.msra.mxu0 0.0
    %608 = vmatpush.msra.mxu0 0.0
    %609 = vmatpush.msra.mxu0 0.0
    %610 = vmatpush.msra.mxu0 0.0
    %611 = vmatpush.msra.mxu0 0.0
    %612 = vmatpush.msra.mxu0 0.0
    %613 = vmatpush.msra.mxu0 0.0
    %614 = vmatpush.msra.mxu0 0.0
    %615 = vmatpush.msra.mxu0 0.0
    %616 = vmatpush.msra.mxu0 0.0
    %617 = vmatpush.msra.mxu0 0.0
    %618 = vmatpush.msra.mxu0 %v64
    %619 = vmatmul.f32.gmra.mxu0 %v598
    %v620 = vpop.f32.mrf.mxu0
    %v621 = vadd.f32 0.0, %v620
    %622 = vmatmul.f32.gmra.mxu0 %v601
    %v623 = vpop.f32.mrf.mxu0
    %v624 = vadd.f32 0.0, %v623
    %625 = vdwg.mxu0
    %v626 = vadd.f32 %v434, %v621
    %v627 = vadd.f32 %v437, %v624
    %628 = vrot.lane.b32.xlu0 %v57, 104
    %v629 = vpop.permute.xlu0 %628
    %630 = vrot.lane.b32.xlu0 %v57, 72
    %v631 = vpop.permute.xlu0 %630
    %v632 = vsel %vm69, %v629, 0
    %v634 = vsel %vm69, %v631, 0
    %636 = vmatpush.xpose.msra.mxu0 0.0
    %637 = vmatpush.xpose.msra.mxu0 0.0
    %638 = vmatpush.xpose.msra.mxu0 0.0
    %639 = vmatpush.xpose.msra.mxu0 0.0
    %640 = vmatpush.xpose.msra.mxu0 0.0
    %641 = vmatpush.xpose.msra.mxu0 0.0
    %642 = vmatpush.xpose.msra.mxu0 0.0
    %643 = vmatpush.xpose.msra.mxu0 0.0
    %644 = vmatpush.xpose.msra.mxu0 0.0
    %645 = vmatpush.xpose.msra.mxu0 0.0
    %646 = vmatpush.xpose.msra.mxu0 0.0
    %647 = vmatpush.xpose.msra.mxu0 0.0
    %648 = vmatpush.xpose.msra.mxu0 0.0
    %649 = vmatpush.xpose.msra.mxu0 0.0
    %650 = vmatpush.xpose.msra.mxu0 0.0
    %651 = vmatpush.xpose.msra.mxu0 %v634
    %652 = vmatmul.f32.gmra.mxu0 %v632
    %v653 = vpop.f32.mrf.mxu0
    %v654 = vadd.f32 0.0, %v653
    %655 = vdwg.mxu0
    %656 = vrot.lane.b32.xlu0 %v60, 104
    %v657 = vpop.permute.xlu0 %656
    %658 = vrot.lane.b32.xlu0 %v60, 72
    %v659 = vpop.permute.xlu0 %658
    %v660 = vsel %vm69, %v657, 0
    %v662 = vsel %vm69, %v659, 0
    %664 = vmatpush.xpose.msra.mxu0 0.0
    %665 = vmatpush.xpose.msra.mxu0 0.0
    %666 = vmatpush.xpose.msra.mxu0 0.0
    %667 = vmatpush.xpose.msra.mxu0 0.0
    %668 = vmatpush.xpose.msra.mxu0 0.0
    %669 = vmatpush.xpose.msra.mxu0 0.0
    %670 = vmatpush.xpose.msra.mxu0 0.0
    %671 = vmatpush.xpose.msra.mxu0 0.0
    %672 = vmatpush.xpose.msra.mxu0 0.0
    %673 = vmatpush.xpose.msra.mxu0 0.0
    %674 = vmatpush.xpose.msra.mxu0 0.0
    %675 = vmatpush.xpose.msra.mxu0 0.0
    %676 = vmatpush.xpose.msra.mxu0 0.0
    %677 = vmatpush.xpose.msra.mxu0 0.0
    %678 = vmatpush.xpose.msra.mxu0 0.0
    %679 = vmatpush.xpose.msra.mxu0 %v662
    %680 = vmatmul.f32.gmra.mxu0 %v660
    %v681 = vpop.f32.mrf.mxu0
    %v682 = vadd.f32 0.0, %v681
    %683 = vdwg.mxu0
    %v684 = vmul.f32 %v654, 0.35355338
    %v685 = vmul.f32 %v682, 0.35355338
    %v686 = vsel %vm69, %v684, -inf
    %687 = vmax.xlane.f32.xlu0 %v686
    %v688 = vpop.xlane.xlu0 %687
    %v689 = vsel %vm69, %v685, -inf
    %690 = vmax.xlane.f32.xlu0 %v689
    %v691 = vpop.xlane.xlu0 %690
    %v692 = vsub.f32 %v684, %v688
    %v693 = vsub.f32 %v685, %v691
    %v694 = vmul.f32 %v692, 1.442695
    %v695 = vpow.pop %v694
    %v696 = vmul.f32 %v693, 1.442695
    %v697 = vpow.pop %v696
    %v698 = vsel %vm69, %v695, 0.0
    %699 = vadd.xlane.f32.xlu0 %v698
    %v700 = vpop.xlane.xlu0 %699
    %v701 = vsel %vm69, %v697, 0.0
    %702 = vadd.xlane.f32.xlu0 %v701
    %v703 = vpop.xlane.xlu0 %702
    %v704 = vrcp.pop %v700
    %v705 = vmul.f32 %v700, %v704
    %v706 = vsub.f32 1.0, %v705
    %v707 = vmul.f32 %v704, %v706
    %v708 = vadd.f32 %v704, %v707
    %vm709 = vweird.f32 %v700
    %vm710 = vweird.f32 %v704
    %vm711 = vmor %vm709, %vm710
    %v712 = vsel %vm711, %v704, %v708
    %v713 = vand.u32 2147483647, %v700
    %vm714 = vcmp.eq.f32.partialorder %v713, 8.507059e+37
    %v715 = vand.u32 %v700, 2147483648
    %v716 = vor.u32 1.1754944e-38, %v715
    %v717 = vsel %vm714, %v716, %v712
    %v718 = vmul.f32 %v695, %v717
    %v719 = vrcp.pop %v703
    %v720 = vmul.f32 %v703, %v719
    %v721 = vsub.f32 1.0, %v720
    %v722 = vmul.f32 %v719, %v721
    %v723 = vadd.f32 %v719, %v722
    %vm724 = vweird.f32 %v703
    %vm725 = vweird.f32 %v719
    %vm726 = vmor %vm724, %vm725
    %v727 = vsel %vm726, %v719, %v723
    %v728 = vand.u32 2147483647, %v703
    %vm729 = vcmp.eq.f32.partialorder %v728, 8.507059e+37
    %v730 = vand.u32 %v703, 2147483648
    %v731 = vor.u32 1.1754944e-38, %v730
    %v732 = vsel %vm729, %v731, %v727
    %v733 = vmul.f32 %v697, %v732
    %734 = vrot.lane.b32.xlu0 %v57, 40
    %v735 = vpop.permute.xlu0 %734
    %v738 = vsel %vm69, %v718, 0
    %740 = vmatpush.msra.mxu0 0.0
    %741 = vmatpush.msra.mxu0 0.0
    %742 = vmatpush.msra.mxu0 0.0
    %743 = vmatpush.msra.mxu0 0.0
    %744 = vmatpush.msra.mxu0 0.0
    %745 = vmatpush.msra.mxu0 0.0
    %746 = vmatpush.msra.mxu0 0.0
    %747 = vmatpush.msra.mxu0 0.0
    %748 = vmatpush.msra.mxu0 0.0
    %749 = vmatpush.msra.mxu0 0.0
    %750 = vmatpush.msra.mxu0 0.0
    %751 = vmatpush.msra.mxu0 0.0
    %752 = vmatpush.msra.mxu0 0.0
    %753 = vmatpush.msra.mxu0 0.0
    %754 = vmatpush.msra.mxu0 0.0
    %755 = vmatpush.msra.mxu0 %v735
    %756 = vmatmul.f32.gmra.mxu0 %v738
    %v757 = vpop.f32.mrf.mxu0
    %v758 = vadd.f32 0.0, %v757
    %759 = vdwg.mxu0
    %760 = vrot.lane.b32.xlu0 %v60, 40
    %v761 = vpop.permute.xlu0 %760
    %v764 = vsel %vm69, %v733, 0
    %766 = vmatpush.msra.mxu0 0.0
    %767 = vmatpush.msra.mxu0 0.0
    %768 = vmatpush.msra.mxu0 0.0
    %769 = vmatpush.msra.mxu0 0.0
    %770 = vmatpush.msra.mxu0 0.0
    %771 = vmatpush.msra.mxu0 0.0
    %772 = vmatpush.msra.mxu0 0.0
    %773 = vmatpush.msra.mxu0 0.0
    %774 = vmatpush.msra.mxu0 0.0
    %775 = vmatpush.msra.mxu0 0.0
    %776 = vmatpush.msra.mxu0 0.0
    %777 = vmatpush.msra.mxu0 0.0
    %778 = vmatpush.msra.mxu0 0.0
    %779 = vmatpush.msra.mxu0 0.0
    %780 = vmatpush.msra.mxu0 0.0
    %781 = vmatpush.msra.mxu0 %v761
    %782 = vmatmul.f32.gmra.mxu0 %v764
    %v783 = vpop.f32.mrf.mxu0
    %v784 = vadd.f32 0.0, %v783
    %785 = vdwg.mxu0
    %v787 = vsel %vm69, %v758, 0
    %v790 = vsel %vm69, %v784, 0
    %792 = vmatpush.msra.mxu0 0.0
    %793 = vmatpush.msra.mxu0 0.0
    %794 = vmatpush.msra.mxu0 0.0
    %795 = vmatpush.msra.mxu0 0.0
    %796 = vmatpush.msra.mxu0 0.0
    %797 = vmatpush.msra.mxu0 0.0
    %798 = vmatpush.msra.mxu0 0.0
    %799 = vmatpush.msra.mxu0 0.0
    %800 = vmatpush.msra.mxu0 0.0
    %801 = vmatpush.msra.mxu0 0.0
    %802 = vmatpush.msra.mxu0 0.0
    %803 = vmatpush.msra.mxu0 0.0
    %804 = vmatpush.msra.mxu0 0.0
    %805 = vmatpush.msra.mxu0 0.0
    %806 = vmatpush.msra.mxu0 0.0
    %807 = vmatpush.msra.mxu0 %v65
    %808 = vmatmul.f32.gmra.mxu0 %v787
    %v809 = vpop.f32.mrf.mxu0
    %v810 = vadd.f32 0.0, %v809
    %811 = vmatmul.f32.gmra.mxu0 %v790
    %v812 = vpop.f32.mrf.mxu0
    %v813 = vadd.f32 0.0, %v812
    %814 = vdwg.mxu0
    %v815 = vadd.f32 %v626, %v810
    %v816 = vadd.f32 %v627, %v813
    %v817 = vperm.slane %v26, 2
    %v818 = vadd.f32 %v815, %v817
    %v819 = vadd.f32 %v816, %v817
    %v820 = vadd.f32 %v24, %v818
    %v821 = vadd.f32 %v25, %v819
    %v822 = vsel %vm32, %v820, 0.0
    %823 = vadd.xlane.f32.xlu0 %v822
    %v824 = vpop.xlane.xlu0 %823
    %v825 = vsel %vm32, %v821, 0.0
    %826 = vadd.xlane.f32.xlu0 %v825
    %v827 = vpop.xlane.xlu0 %826
    %v828 = vrcp.pop 32.0
    %v829 = vmul.f32 32.0, %v828
    %v830 = vsub.f32 1.0, %v829
    %v831 = vmul.f32 %v828, %v830
    %v832 = vadd.f32 %v828, %v831
    %vm833 = vweird.f32 %v828
    %v834 = vsel %vm833, %v828, %v832
    %v835 = vmul.f32 %v824, %v834
    %v836 = vmul.f32 %v827, %v834
    %v837 = vmul.f32 %v820, %v820
    %v838 = vmul.f32 %v821, %v821
    %v839 = vsel %vm32, %v837, 0.0
    %840 = vadd.xlane.f32.xlu0 %v839
    %v841 = vpop.xlane.xlu0 %840
    %v842 = vsel %vm32, %v838, 0.0
    %843 = vadd.xlane.f32.xlu0 %v842
    %v844 = vpop.xlane.xlu0 %843
    %v845 = vmul.f32 %v841, %v834
    %v846 = vmul.f32 %v844, %v834
    %v847 = vmul.f32 %v835, %v835
    %v848 = vmul.f32 %v836, %v836
    %v849 = vsub.f32 %v845, %v847
    %v850 = vsub.f32 %v846, %v848
    %v851 = vsub.f32 %v820, %v835
    %v852 = vsub.f32 %v821, %v836
    %v853 = vadd.f32 %v849, 1e-05
    %v854 = vadd.f32 %v850, 1e-05
    %v855 = vrsqrt.pop %v853
    %v856 = vmul.f32 %v855, %v853
    %v857 = vmul.f32 %v856, %v855
    %v858 = vmul.f32 0.5, %v857
    %v859 = vsub.f32 1.5, %v858
    %v860 = vmul.f32 %v855, %v859
    %vm861 = vweird.f32 %v853
    %vm862 = vweird.f32 %v855
    %vm863 = vmor %vm861, %vm862
    %v864 = vsel %vm863, %v855, %v860
    %v865 = vrsqrt.pop %v854
    %v866 = vmul.f32 %v865, %v854
    %v867 = vmul.f32 %v866, %v865
    %v868 = vmul.f32 0.5, %v867
    %v869 = vsub.f32 1.5, %v868
    %v870 = vmul.f32 %v865, %v869
    %vm871 = vweird.f32 %v854
    %vm872 = vweird.f32 %v865
    %vm873 = vmor %vm871, %vm872
    %v874 = vsel %vm873, %v865, %v870
    %v875 = vmul.f32 %v851, %v864
    %v876 = vmul.f32 %v852, %v874
    %v877 = vperm.slane %v26, 3
    %v878 = vmul.f32 %v875, %v877
    %v879 = vmul.f32 %v876, %v877
    %v880 = vperm.slane %v26, 4
    %v881 = vadd.f32 %v878, %v880
    %v882 = vadd.f32 %v879, %v880
    %v883 = vld [vmem:[%s3] sm:$0xff]
    %v884 = vld [vmem:[%s3 + $0x8] sm:$0xff]
    %v885 = vld [vmem:[%s3 + $0x10] sm:$0xff]
    %v886 = vld [vmem:[%s3 + $0x18] sm:$0xff]
    %v887 = vperm.slane %v26, 1
    %v889 = vsel %vm32, %v881, 0
    %v892 = vsel %vm32, %v882, 0
    %894 = vmatpush.msra.mxu0 0.0
    %895 = vmatpush.msra.mxu0 0.0
    %896 = vmatpush.msra.mxu0 0.0
    %897 = vmatpush.msra.mxu0 0.0
    %898 = vmatpush.msra.mxu0 0.0
    %899 = vmatpush.msra.mxu0 0.0
    %900 = vmatpush.msra.mxu0 0.0
    %901 = vmatpush.msra.mxu0 0.0
    %902 = vmatpush.msra.mxu0 0.0
    %903 = vmatpush.msra.mxu0 0.0
    %904 = vmatpush.msra.mxu0 0.0
    %905 = vmatpush.msra.mxu0 0.0
    %906 = vmatpush.msra.mxu0 %v886
    %907 = vmatpush.msra.mxu0 %v885
    %908 = vmatpush.msra.mxu0 %v884
    %909 = vmatpush.msra.mxu0 %v883
    %910 = vmatmul.f32.gmra.mxu0 %v889
    %v911 = vpop.f32.mrf.mxu0
    %v912 = vadd.f32 %v887, %v911
    %913 = vmatmul.f32.gmra.mxu0 %v892
    %v914 = vpop.f32.mrf.mxu0
    %v915 = vadd.f32 %v887, %v914
    %916 = vdwg.mxu0
    %v917 = vmax.f32 %v912, 0.0
    %v918 = vmax.f32 %v915, 0.0
    %v919 = vld [vmem:[%s4] sm:$0xff]
    %v920 = vld [vmem:[%s4 + $0x8] sm:$0xff]
    %v921 = vld [vmem:[%s4 + $0x10] sm:$0xff]
    %v922 = vld [vmem:[%s4 + $0x18] sm:$0xff]
    %v923 = vld [vmem:[%s4 + $0x20] sm:$0xff]
    %v924 = vld [vmem:[%s4 + $0x28] sm:$0xff]
    %v925 = vld [vmem:[%s4 + $0x30] sm:$0xff]
    %v926 = vld [vmem:[%s4 + $0x38] sm:$0xff]
    %v927 = vld [vmem:[%s4 + $0x40] sm:$0xff]
    %v928 = vld [vmem:[%s4 + $0x48] sm:$0xff]
    %v929 = vld [vmem:[%s4 + $0x50] sm:$0xff]
    %v930 = vld [vmem:[%s4 + $0x58] sm:$0xff]
    %v931 = vld [vmem:[%s4 + $0x60] sm:$0xff]
    %v932 = vld [vmem:[%s4 + $0x68] sm:$0xff]
    %v933 = vld [vmem:[%s4 + $0x70] sm:$0xff]
    %v934 = vld [vmem:[%s4 + $0x78] sm:$0xff]
    %v935 = vperm.slane %v26, 5
    %936 = vmatpush.msra.mxu0 %v934
    %937 = vmatpush.msra.mxu0 %v933
    %938 = vmatpush.msra.mxu0 %v932
    %939 = vmatpush.msra.mxu0 %v931
    %940 = vmatpush.msra.mxu0 %v930
    %941 = vmatpush.msra.mxu0 %v929
    %942 = vmatpush.msra.mxu0 %v928
    %943 = vmatpush.msra.mxu0 %v927
    %944 = vmatpush.msra.mxu0 %v926
    %945 = vmatpush.msra.mxu0 %v925
    %946 = vmatpush.msra.mxu0 %v924
    %947 = vmatpush.msra.mxu0 %v923
    %948 = vmatpush.msra.mxu0 %v922
    %949 = vmatpush.msra.mxu0 %v921
    %950 = vmatpush.msra.mxu0 %v920
    %951 = vmatpush.msra.mxu0 %v919
    %952 = vmatmul.f32.gmra.mxu0 %v917
    %v953 = vpop.f32.mrf.mxu0
    %v954 = vadd.f32 %v935, %v953
    %955 = vmatmul.f32.gmra.mxu0 %v918
    %v956 = vpop.f32.mrf.mxu0
    %v957 = vadd.f32 %v935, %v956
    %958 = vdwg.mxu0
    %v959 = vadd.f32 %v881, %v954
    %v960 = vadd.f32 %v882, %v957
    %v961 = vsel %vm32, %v959, 0.0
    %962 = vadd.xlane.f32.xlu0 %v961
    %v963 = vpop.xlane.xlu0 %962
    %v964 = vsel %vm32, %v960, 0.0
    %965 = vadd.xlane.f32.xlu0 %v964
    %v966 = vpop.xlane.xlu0 %965
    %v967 = vmul.f32 %v963, %v834
    %v968 = vmul.f32 %v966, %v834
    %v969 = vmul.f32 %v959, %v959
    %v970 = vmul.f32 %v960, %v960
    %v971 = vsel %vm32, %v969, 0.0
    %972 = vadd.xlane.f32.xlu0 %v971
    %v973 = vpop.xlane.xlu0 %972
    %v974 = vsel %vm32, %v970, 0.0
    %975 = vadd.xlane.f32.xlu0 %v974
    %v976 = vpop.xlane.xlu0 %975
    %v977 = vmul.f32 %v973, %v834
    %v978 = vmul.f32 %v976, %v834
    %v979 = vmul.f32 %v967, %v967
    %v980 = vmul.f32 %v968, %v968
    %v981 = vsub.f32 %v977, %v979
    %v982 = vsub.f32 %v978, %v980
    %v983 = vsub.f32 %v959, %v967
    %v984 = vsub.f32 %v960, %v968
    %v985 = vadd.f32 %v981, 1e-05
    %v986 = vadd.f32 %v982, 1e-05
    %v987 = vrsqrt.pop %v985
    %v988 = vmul.f32 %v987, %v985
    %v989 = vmul.f32 %v988, %v987
    %v990 = vmul.f32 0.5, %v989
    %v991 = vsub.f32 1.5, %v990
    %v992 = vmul.f32 %v987, %v991
    %vm993 = vweird.f32 %v985
    %vm994 = vweird.f32 %v987
    %vm995 = vmor %vm993, %vm994
    %v996 = vsel %vm995, %v987, %v992
    %v997 = vrsqrt.pop %v986
    %v998 = vmul.f32 %v997, %v986
    %v999 = vmul.f32 %v998, %v997
    %v1000 = vmul.f32 0.5, %v999
    %v1001 = vsub.f32 1.5, %v1000
    %v1002 = vmul.f32 %v997, %v1001
    %vm1003 = vweird.f32 %v986
    %vm1004 = vweird.f32 %v997
    %vm1005 = vmor %vm1003, %vm1004
    %v1006 = vsel %vm1005, %v997, %v1002
    %v1007 = vmul.f32 %v983, %v996
    %v1008 = vmul.f32 %v984, %v1006
    %v1009 = vperm.slane %v26, 6
    %v1010 = vmul.f32 %v1007, %v1009
    %v1011 = vmul.f32 %v1008, %v1009
    %v1012 = vperm.slane %v26, 7
    %v1013 = vadd.f32 %v1010, %v1012
    %v1014 = vadd.f32 %v1011, %v1012
    %1015 = vst.msk [vmem:[#allocation2] sm:$0xff] %vm32, %v1013
    %1016 = vst.msk [vmem:[#allocation2 + $0x8] sm:$0xff] %vm32, %v1014
    // Predicated region
    $region26: #{eblock_forward.1} parent=1 // pred_check
      _
    $region27: #{eblock_forward.1} parent=1 // pred_check_branch
      %1018 = sbr.rel (0) target = $region29
    $region28: #{eblock_forward.1} parent=1 // pred_region
      %1020 = vsyncadd [#allocation3], 0
      %s1021 = sshll.u32 [#allocation2], 4
      %s1022 = int_to_ptr.vmem [resolvable:$true] %s1021
      %s1023 = sshll.u32 %s6, 4
      %s1024 = int_to_ptr.hbm [resolvable:$true] %s1023
      %1029 = dma.vmem_to_hbm [thread:$0]  %s1022, 256, %s1024, [#allocation3], 128, 128, 8
    $region29: #{eblock_forward.1} parent=1 // pred_fallthru
      _
    // Predicated region
    $region30: #{eblock_forward.1} parent=1 // pred_check
      _
    $region31: #{eblock_forward.1} parent=1 // pred_check_branch
      %1031 = sbr.rel (0) target = $region33
    $region32: #{eblock_forward.1} parent=1 // pred_region
      %1033 = dma.done [#allocation3], 256
    $region33: #{eblock_forward.1} parent=1 // pred_fallthru
      _
    %1034 = vsyncpa [#allocation3], 1

</llo_original>
